<compile_context>
chip_gen: v7x
topology: tpu7x:2x2x1
jax: 0.10.0
libtpu: 0.0.40
codegen_flags: <defaults>
</compile_context>

<pallas_src>
import functools

import jax
import jax.numpy as jnp
from jax.experimental import pallas as pl
from jax.experimental.pallas import tpu as pltpu


# ----------------------------------------------------------------------------
# Kernel
# ----------------------------------------------------------------------------
def _discriminator_kernel(x_ref,
                          w1_ref, b1_ref,
                          w2_ref, b2_ref,
                          w3_ref, b3_ref,
                          w4_ref, b4_ref,
                          out_ref):
    """One batch tile of sigmoid(L4(relu(L3(relu(L2(relu(L1(x))))))))."""
    # Native-dtype inputs straight onto the MXU, f32 accumulation.
    h = jnp.dot(x_ref[...], w1_ref[...], preferred_element_type=jnp.float32)
    h = jnp.maximum(h + b1_ref[...].astype(jnp.float32), 0.0)

    h = jnp.dot(h.astype(w2_ref.dtype), w2_ref[...],
                preferred_element_type=jnp.float32)
    h = jnp.maximum(h + b2_ref[...].astype(jnp.float32), 0.0)

    h = jnp.dot(h.astype(w3_ref.dtype), w3_ref[...],
                preferred_element_type=jnp.float32)
    h = jnp.maximum(h + b3_ref[...].astype(jnp.float32), 0.0)

    z = jnp.dot(h.astype(w4_ref.dtype), w4_ref[...],
                preferred_element_type=jnp.float32)
    z = z + b4_ref[...].astype(jnp.float32)

    # Probabilities kept in f32 (out_ref is f32).
    out_ref[...] = jax.nn.sigmoid(z).astype(out_ref.dtype)


# ----------------------------------------------------------------------------
# Parameters
# ----------------------------------------------------------------------------
def init_discriminator_params(key, emb_dim, hidden_size, dtype=jnp.float32):
    """Deterministic synthetic params.  Weights stored as [in, out]."""
    ks = jax.random.split(key, 8)

    def lin(kw, kb, d_in, d_out):
        w = (jax.random.normal(kw, (d_in, d_out), jnp.float32)
             * (1.0 / jnp.sqrt(d_in))).astype(dtype)
        b = jax.random.normal(kb, (1, d_out), jnp.float32) * 0.01  # keep f32
        return w, b

    w1, b1 = lin(ks[0], ks[1], emb_dim, hidden_size)
    w2, b2 = lin(ks[2], ks[3], hidden_size, hidden_size)
    w3, b3 = lin(ks[4], ks[5], hidden_size, hidden_size)
    w4, b4 = lin(ks[6], ks[7], hidden_size, 2)
    return dict(w1=w1, b1=b1, w2=w2, b2=b2, w3=w3, b3=b3, w4=w4, b4=b4)


# ----------------------------------------------------------------------------
# Wrapper
# ----------------------------------------------------------------------------
_LANE = 128


def _round_up(x, m):
    return ((x + m - 1) // m) * m


def _pad2d(a, rows, cols):
    pr, pc = rows - a.shape[0], cols - a.shape[1]
    if pr or pc:
        a = jnp.pad(a, ((0, pr), (0, pc)))
    return a


@functools.partial(jax.jit, static_argnames=("tile_b", "weight_buffers"))
def _discriminator_probs_impl(embs, params, tile_b, weight_buffers):
    B, E = embs.shape
    H = params["w1"].shape[1]
    n_out = params["w4"].shape[1]

    # Lane-dense padded feature dims.
    Ep = _round_up(E, _LANE)
    Hp = _round_up(H, _LANE)
    Op = _round_up(n_out, _LANE)

    # Large batch tiles; prefer >= 2 grid steps so v7x's two TensorCores can
    # each take half of the (parallel) batch axis.
    tb = min(tile_b, _round_up(B, 8))
    if tb == _round_up(B, 8) and tb >= 16:
        tb = _round_up(tb // 2, 8)
    Bp = _round_up(B, tb)

    x = _pad2d(embs, Bp, Ep)
    w1 = _pad2d(params["w1"], Ep, Hp)
    b1 = _pad2d(params["b1"], 1, Hp)
    w2 = _pad2d(params["w2"], Hp, Hp)
    b2 = _pad2d(params["b2"], 1, Hp)
    w3 = _pad2d(params["w3"], Hp, Hp)
    b3 = _pad2d(params["b3"], 1, Hp)
    w4 = _pad2d(params["w4"], Hp, Op)
    b4 = _pad2d(params["b4"], 1, Op)

    # Resident weight/bias blocks: constant index map; single-buffered when
    # the running JAX supports pipeline_mode=pl.Buffered(1).
    if weight_buffers:
        def res(shape):
            return pl.BlockSpec(shape, lambda i: (0, 0),
                                pipeline_mode=pl.Buffered(
                                    buffer_count=weight_buffers))
    else:
        def res(shape):
            return pl.BlockSpec(shape, lambda i: (0, 0))

    wbytes = sum(int(a.size) * a.dtype.itemsize
                 for a in (w1, b1, w2, b2, w3, b3, w4, b4))
    abytes = (2 * tb * Ep * x.dtype.itemsize      # double-buffered input tile
              + 2 * tb * Op * 4                   # double-buffered output tile
              + 4 * tb * Hp * 4)                  # in-kernel activations
    vmem_limit = int(min(max(2 * (wbytes + abytes), 32 * 1024 * 1024),
                         64 * 1024 * 1024))

    flops = 2 * Bp * (Ep * Hp + 2 * Hp * Hp + Hp * Op)
    cost = pl.CostEstimate(
        flops=flops,
        transcendentals=Bp * Op,                       # sigmoid
        bytes_accessed=wbytes
        + int(x.size) * x.dtype.itemsize
        + Bp * Op * 4,
    )

    out = pl.pallas_call(
        _discriminator_kernel,
        out_shape=jax.ShapeDtypeStruct((Bp, Op), jnp.float32),
        grid=(Bp // tb,),
        in_specs=[
            pl.BlockSpec((tb, Ep), lambda i: (i, 0)),   # batch tile of embs
            res((Ep, Hp)), res((1, Hp)),                # layer 1
            res((Hp, Hp)), res((1, Hp)),                # layer 2
            res((Hp, Hp)), res((1, Hp)),                # layer 3
            res((Hp, Op)), res((1, Op)),                # layer 4
        ],
        out_specs=pl.BlockSpec((tb, Op), lambda i: (i, 0)),
        compiler_params=pltpu.CompilerParams(
            dimension_semantics=("parallel",),
            vmem_limit_bytes=vmem_limit,
        ),
        cost_estimate=cost,
    )(x, w1, b1, w2, b2, w3, b3, w4, b4)

    # Strip batch padding and the lane padding of the 2-wide logits.
    return out[:B, :n_out]


def discriminator_probs(embs, params, tile_b=256):
    """sigmoid(mlp(embs)) as f32 probabilities via one fused Pallas kernel."""
    try:
        return _discriminator_probs_impl(embs, params, tile_b=tile_b,
                                         weight_buffers=1)
    except Exception:
        # Compatibility fallback: default (double-buffered) weight pipelining
        # if this JAX build rejects pipeline_mode=pl.Buffered(1).
        return _discriminator_probs_impl(embs, params, tile_b=tile_b,
                                         weight_buffers=0)


def discriminator_forward(embs, params, labels=None, tile_b=256):
    """Matches Discriminator.forward: returns probs, or (probs, loss).

    Note: like the PyTorch original, 'loss' is torch.nn.NLLLoss applied to the
    *sigmoid* outputs, i.e. -mean(probs[i, labels[i]]) — reproduced verbatim,
    it is not a true log-likelihood.
    """
    logits = discriminator_probs(embs, params, tile_b=tile_b)
    if labels is not None:
        picked = jnp.take_along_axis(logits, labels[:, None], axis=1)[:, 0]
        loss = -jnp.mean(picked)
        return logits, loss
    return logits


# ----------------------------------------------------------------------------
# Pure-JAX reference
# ----------------------------------------------------------------------------
def _reference_forward(embs, params, labels=None):
    f32 = lambda a: a.astype(jnp.float32)
    h = jnp.maximum(f32(embs) @ f32(params["w1"]) + f32(params["b1"]), 0.0)
    h = jnp.maximum(h @ f32(params["w2"]) + f32(params["b2"]), 0.0)
    h = jnp.maximum(h @ f32(params["w3"]) + f32(params["b3"]), 0.0)
    logits = jax.nn.sigmoid(h @ f32(params["w4"]) + f32(params["b4"]))
    if labels is not None:
        picked = jnp.take_along_axis(logits, labels[:, None], axis=1)[:, 0]
        return logits, -jnp.mean(picked)
    return logits


# ----------------------------------------------------------------------------
# Demo / self-check
# ----------------------------------------------------------------------------
if __name__ == "__main__":
    B, EMB_DIM, HIDDEN = 8, 32, 32

    key = jax.random.PRNGKey(0)
    k_emb, k_par, k_lab = jax.random.split(key, 3)

    embs = jax.random.normal(k_emb, (B, EMB_DIM), jnp.float32)
    params = init_discriminator_params(k_par, EMB_DIM, HIDDEN)
    labels = jax.random.randint(k_lab, (B,), 0, 2)

    logits = discriminator_forward(embs, params)
    logits2, loss = discriminator_forward(embs, params, labels)
    jax.block_until_ready((logits, logits2, loss))

    ref_logits, ref_loss = _reference_forward(embs, params, labels)
    assert logits.shape == (B, 2)
    assert jnp.allclose(logits, ref_logits, atol=2e-5, rtol=2e-5)
    assert jnp.allclose(logits2, ref_logits, atol=2e-5, rtol=2e-5)
    assert jnp.allclose(loss, ref_loss, atol=2e-5, rtol=2e-5)

    print("KERNEL_OK")
</pallas_src>

<mosaic_0001>
module attributes {stable_mosaic.version = 11 : i64} {
  func.func @_discriminator_kernel(%arg0: i32, %arg1: memref<8x128xf32, #tpu.memory_space<vmem>>, %arg2: memref<128x128xf32, #tpu.memory_space<vmem>>, %arg3: memref<1x128xf32, #tpu.memory_space<vmem>>, %arg4: memref<128x128xf32, #tpu.memory_space<vmem>>, %arg5: memref<1x128xf32, #tpu.memory_space<vmem>>, %arg6: memref<128x128xf32, #tpu.memory_space<vmem>>, %arg7: memref<1x128xf32, #tpu.memory_space<vmem>>, %arg8: memref<128x128xf32, #tpu.memory_space<vmem>>, %arg9: memref<1x128xf32, #tpu.memory_space<vmem>>, %arg10: memref<8x128xf32, #tpu.memory_space<vmem>>) attributes {dimension_semantics = [#tpu.dimension_semantics<parallel>], iteration_bounds = array<i64: 1>, scalar_prefetch = 0 : i64, scratch_operands = 0 : i64, tpu.core_type = #tpu.core_type<tc>, window_params = [{transform_indices = @transform_0, window_bounds = array<i64: 8, 128>}, {pipeline_mode = #tpu.pipeline_mode<synchronous>, transform_indices = @transform_1, window_bounds = array<i64: 128, 128>}, {pipeline_mode = #tpu.pipeline_mode<synchronous>, transform_indices = @transform_2, window_bounds = array<i64: 1, 128>}, {pipeline_mode = #tpu.pipeline_mode<synchronous>, transform_indices = @transform_3, window_bounds = array<i64: 128, 128>}, {pipeline_mode = #tpu.pipeline_mode<synchronous>, transform_indices = @transform_4, window_bounds = array<i64: 1, 128>}, {pipeline_mode = #tpu.pipeline_mode<synchronous>, transform_indices = @transform_5, window_bounds = array<i64: 128, 128>}, {pipeline_mode = #tpu.pipeline_mode<synchronous>, transform_indices = @transform_6, window_bounds = array<i64: 1, 128>}, {pipeline_mode = #tpu.pipeline_mode<synchronous>, transform_indices = @transform_7, window_bounds = array<i64: 128, 128>}, {pipeline_mode = #tpu.pipeline_mode<synchronous>, transform_indices = @transform_8, window_bounds = array<i64: 1, 128>}, {transform_indices = @transform_9, window_bounds = array<i64: 8, 128>}]} {
    %c0 = arith.constant 0 : index
    %c0_0 = arith.constant 0 : index
    %0 = vector.load %arg1[%c0, %c0_0] : memref<8x128xf32, #tpu.memory_space<vmem>>, vector<8x128xf32>
    %c0_1 = arith.constant 0 : index
    %c0_2 = arith.constant 0 : index
    %1 = vector.load %arg2[%c0_1, %c0_2] : memref<128x128xf32, #tpu.memory_space<vmem>>, vector<128x128xf32>
    %cst = arith.constant dense<0.000000e+00> : vector<8x128xf32>
    %2 = tpu.matmul %0, %1, %cst {dimension_numbers = #tpu.dot_dimension_numbers<[1], [0], [0], [1], [0, 0, 1, 1], [], []>} : vector<8x128xf32>, vector<128x128xf32>, vector<8x128xf32> -> vector<8x128xf32>
    %c0_3 = arith.constant 0 : index
    %c0_4 = arith.constant 0 : index
    %3 = vector.load %arg3[%c0_3, %c0_4] : memref<1x128xf32, #tpu.memory_space<vmem>>, vector<1x128xf32>
    %4 = vector.broadcast %3 : vector<1x128xf32> to vector<8x128xf32>
    %5 = arith.addf %2, %4 : vector<8x128xf32>
    %cst_5 = arith.constant 0.000000e+00 : f32
    %6 = vector.broadcast %cst_5 : f32 to vector<8x128xf32>
    %7 = arith.maximumf %5, %6 : vector<8x128xf32>
    %c0_6 = arith.constant 0 : index
    %c0_7 = arith.constant 0 : index
    %8 = vector.load %arg4[%c0_6, %c0_7] : memref<128x128xf32, #tpu.memory_space<vmem>>, vector<128x128xf32>
    %cst_8 = arith.constant dense<0.000000e+00> : vector<8x128xf32>
    %9 = tpu.matmul %7, %8, %cst_8 {dimension_numbers = #tpu.dot_dimension_numbers<[1], [0], [0], [1], [0, 0, 1, 1], [], []>} : vector<8x128xf32>, vector<128x128xf32>, vector<8x128xf32> -> vector<8x128xf32>
    %c0_9 = arith.constant 0 : index
    %c0_10 = arith.constant 0 : index
    %10 = vector.load %arg5[%c0_9, %c0_10] : memref<1x128xf32, #tpu.memory_space<vmem>>, vector<1x128xf32>
    %11 = vector.broadcast %10 : vector<1x128xf32> to vector<8x128xf32>
    %12 = arith.addf %9, %11 : vector<8x128xf32>
    %cst_11 = arith.constant 0.000000e+00 : f32
    %13 = vector.broadcast %cst_11 : f32 to vector<8x128xf32>
    %14 = arith.maximumf %12, %13 : vector<8x128xf32>
    %c0_12 = arith.constant 0 : index
    %c0_13 = arith.constant 0 : index
    %15 = vector.load %arg6[%c0_12, %c0_13] : memref<128x128xf32, #tpu.memory_space<vmem>>, vector<128x128xf32>
    %cst_14 = arith.constant dense<0.000000e+00> : vector<8x128xf32>
    %16 = tpu.matmul %14, %15, %cst_14 {dimension_numbers = #tpu.dot_dimension_numbers<[1], [0], [0], [1], [0, 0, 1, 1], [], []>} : vector<8x128xf32>, vector<128x128xf32>, vector<8x128xf32> -> vector<8x128xf32>
    %c0_15 = arith.constant 0 : index
    %c0_16 = arith.constant 0 : index
    %17 = vector.load %arg7[%c0_15, %c0_16] : memref<1x128xf32, #tpu.memory_space<vmem>>, vector<1x128xf32>
    %18 = vector.broadcast %17 : vector<1x128xf32> to vector<8x128xf32>
    %19 = arith.addf %16, %18 : vector<8x128xf32>
    %cst_17 = arith.constant 0.000000e+00 : f32
    %20 = vector.broadcast %cst_17 : f32 to vector<8x128xf32>
    %21 = arith.maximumf %19, %20 : vector<8x128xf32>
    %c0_18 = arith.constant 0 : index
    %c0_19 = arith.constant 0 : index
    %22 = vector.load %arg8[%c0_18, %c0_19] : memref<128x128xf32, #tpu.memory_space<vmem>>, vector<128x128xf32>
    %cst_20 = arith.constant dense<0.000000e+00> : vector<8x128xf32>
    %23 = tpu.matmul %21, %22, %cst_20 {dimension_numbers = #tpu.dot_dimension_numbers<[1], [0], [0], [1], [0, 0, 1, 1], [], []>} : vector<8x128xf32>, vector<128x128xf32>, vector<8x128xf32> -> vector<8x128xf32>
    %c0_21 = arith.constant 0 : index
    %c0_22 = arith.constant 0 : index
    %24 = vector.load %arg9[%c0_21, %c0_22] : memref<1x128xf32, #tpu.memory_space<vmem>>, vector<1x128xf32>
    %25 = vector.broadcast %24 : vector<1x128xf32> to vector<8x128xf32>
    %26 = arith.addf %23, %25 : vector<8x128xf32>
    %27 = arith.negf %26 : vector<8x128xf32>
    %28 = math.exp %27 : vector<8x128xf32>
    %cst_23 = arith.constant 1.000000e+00 : f32
    %29 = vector.broadcast %cst_23 : f32 to vector<8x128xf32>
    %30 = arith.addf %29, %28 : vector<8x128xf32>
    %31 = arith.divf %29, %30 : vector<8x128xf32>
    %c0_24 = arith.constant 0 : index
    %c0_25 = arith.constant 0 : index
    %32 = vector.load %arg10[%c0_24, %c0_25] : memref<8x128xf32, #tpu.memory_space<vmem>>, vector<8x128xf32>
    tpu.vector_store %arg10[%c0_24, %c0_25], %31 {strides = array<i32>} : memref<8x128xf32, #tpu.memory_space<vmem>>, vector<8x128xf32>,
    return
  }
  func.func @transform_0(%arg0: i32) -> (i32, i32) {
    %c0_i32 = arith.constant 0 : i32
    %c0_i32_0 = arith.constant 0 : i32
    return %arg0, %c0_i32 : i32, i32
  }
  func.func @transform_1(%arg0: i32) -> (i32, i32) {
    %c0_i32 = arith.constant 0 : i32
    %c0_i32_0 = arith.constant 0 : i32
    %c0_i32_1 = arith.constant 0 : i32
    return %c0_i32, %c0_i32_0 : i32, i32
  }
  func.func @transform_2(%arg0: i32) -> (i32, i32) {
    %c0_i32 = arith.constant 0 : i32
    %c0_i32_0 = arith.constant 0 : i32
    %c0_i32_1 = arith.constant 0 : i32
    return %c0_i32, %c0_i32_0 : i32, i32
  }
  func.func @transform_3(%arg0: i32) -> (i32, i32) {
    %c0_i32 = arith.constant 0 : i32
    %c0_i32_0 = arith.constant 0 : i32
    %c0_i32_1 = arith.constant 0 : i32
    return %c0_i32, %c0_i32_0 : i32, i32
  }
  func.func @transform_4(%arg0: i32) -> (i32, i32) {
    %c0_i32 = arith.constant 0 : i32
    %c0_i32_0 = arith.constant 0 : i32
    %c0_i32_1 = arith.constant 0 : i32
    return %c0_i32, %c0_i32_0 : i32, i32
  }
  func.func @transform_5(%arg0: i32) -> (i32, i32) {
    %c0_i32 = arith.constant 0 : i32
    %c0_i32_0 = arith.constant 0 : i32
    %c0_i32_1 = arith.constant 0 : i32
    return %c0_i32, %c0_i32_0 : i32, i32
  }
  func.func @transform_6(%arg0: i32) -> (i32, i32) {
    %c0_i32 = arith.constant 0 : i32
    %c0_i32_0 = arith.constant 0 : i32
    %c0_i32_1 = arith.constant 0 : i32
    return %c0_i32, %c0_i32_0 : i32, i32
  }
  func.func @transform_7(%arg0: i32) -> (i32, i32) {
    %c0_i32 = arith.constant 0 : i32
    %c0_i32_0 = arith.constant 0 : i32
    %c0_i32_1 = arith.constant 0 : i32
    return %c0_i32, %c0_i32_0 : i32, i32
  }
  func.func @transform_8(%arg0: i32) -> (i32, i32) {
    %c0_i32 = arith.constant 0 : i32
    %c0_i32_0 = arith.constant 0 : i32
    %c0_i32_1 = arith.constant 0 : i32
    return %c0_i32, %c0_i32_0 : i32, i32
  }
  func.func @transform_9(%arg0: i32) -> (i32, i32) {
    %c0_i32 = arith.constant 0 : i32
    %c0_i32_0 = arith.constant 0 : i32
    return %arg0, %c0_i32 : i32, i32
  }
}

module attributes {stable_mosaic.version = 11 : i64} {
  func.func @_discriminator_kernel(%arg0: i32, %arg1: memref<8x128xf32, #tpu.memory_space<vmem>>, %arg2: memref<128x128xf32, #tpu.memory_space<vmem>>, %arg3: memref<1x128xf32, #tpu.memory_space<vmem>>, %arg4: memref<128x128xf32, #tpu.memory_space<vmem>>, %arg5: memref<1x128xf32, #tpu.memory_space<vmem>>, %arg6: memref<128x128xf32, #tpu.memory_space<vmem>>, %arg7: memref<1x128xf32, #tpu.memory_space<vmem>>, %arg8: memref<128x128xf32, #tpu.memory_space<vmem>>, %arg9: memref<1x128xf32, #tpu.memory_space<vmem>>, %arg10: memref<8x128xf32, #tpu.memory_space<vmem>>) attributes {dimension_semantics = [#tpu.dimension_semantics<parallel>], iteration_bounds = array<i64: 1>, scalar_prefetch = 0 : i64, scratch_operands = 0 : i64, tpu.core_type = #tpu.core_type<tc>, window_params = [{transform_indices = @transform_0, window_bounds = array<i64: 8, 128>}, {pipeline_mode = #tpu.pipeline_mode<synchronous>, transform_indices = @transform_1, window_bounds = array<i64: 128, 128>}, {pipeline_mode = #tpu.pipeline_mode<synchronous>, transform_indices = @transform_2, window_bounds = array<i64: 1, 128>}, {pipeline_mode = #tpu.pipeline_mode<synchronous>, transform_indices = @transform_3, window_bounds = array<i64: 128, 128>}, {pipeline_mode = #tpu.pipeline_mode<synchronous>, transform_indices = @transform_4, window_bounds = array<i64: 1, 128>}, {pipeline_mode = #tpu.pipeline_mode<synchronous>, transform_indices = @transform_5, window_bounds = array<i64: 128, 128>}, {pipeline_mode = #tpu.pipeline_mode<synchronous>, transform_indices = @transform_6, window_bounds = array<i64: 1, 128>}, {pipeline_mode = #tpu.pipeline_mode<synchronous>, transform_indices = @transform_7, window_bounds = array<i64: 128, 128>}, {pipeline_mode = #tpu.pipeline_mode<synchronous>, transform_indices = @transform_8, window_bounds = array<i64: 1, 128>}, {transform_indices = @transform_9, window_bounds = array<i64: 8, 128>}]} {
    %c0 = arith.constant 0 : index
    %c0_0 = arith.constant 0 : index
    %0 = vector.load %arg1[%c0, %c0_0] : memref<8x128xf32, #tpu.memory_space<vmem>>, vector<8x128xf32>
    %c0_1 = arith.constant 0 : index
    %c0_2 = arith.constant 0 : index
    %1 = vector.load %arg2[%c0_1, %c0_2] : memref<128x128xf32, #tpu.memory_space<vmem>>, vector<128x128xf32>
    %cst = arith.constant dense<0.000000e+00> : vector<8x128xf32>
    %2 = tpu.matmul %0, %1, %cst {dimension_numbers = #tpu.dot_dimension_numbers<[1], [0], [0], [1], [0, 0, 1, 1], [], []>} : vector<8x128xf32>, vector<128x128xf32>, vector<8x128xf32> -> vector<8x128xf32>
    %c0_3 = arith.constant 0 : index
    %c0_4 = arith.constant 0 : index
    %3 = vector.load %arg3[%c0_3, %c0_4] : memref<1x128xf32, #tpu.memory_space<vmem>>, vector<1x128xf32>
    %4 = vector.broadcast %3 : vector<1x128xf32> to vector<8x128xf32>
    %5 = arith.addf %2, %4 : vector<8x128xf32>
    %cst_5 = arith.constant 0.000000e+00 : f32
    %6 = vector.broadcast %cst_5 : f32 to vector<8x128xf32>
    %7 = arith.maximumf %5, %6 : vector<8x128xf32>
    %c0_6 = arith.constant 0 : index
    %c0_7 = arith.constant 0 : index
    %8 = vector.load %arg4[%c0_6, %c0_7] : memref<128x128xf32, #tpu.memory_space<vmem>>, vector<128x128xf32>
    %cst_8 = arith.constant dense<0.000000e+00> : vector<8x128xf32>
    %9 = tpu.matmul %7, %8, %cst_8 {dimension_numbers = #tpu.dot_dimension_numbers<[1], [0], [0], [1], [0, 0, 1, 1], [], []>} : vector<8x128xf32>, vector<128x128xf32>, vector<8x128xf32> -> vector<8x128xf32>
    %c0_9 = arith.constant 0 : index
    %c0_10 = arith.constant 0 : index
    %10 = vector.load %arg5[%c0_9, %c0_10] : memref<1x128xf32, #tpu.memory_space<vmem>>, vector<1x128xf32>
    %11 = vector.broadcast %10 : vector<1x128xf32> to vector<8x128xf32>
    %12 = arith.addf %9, %11 : vector<8x128xf32>
    %cst_11 = arith.constant 0.000000e+00 : f32
    %13 = vector.broadcast %cst_11 : f32 to vector<8x128xf32>
    %14 = arith.maximumf %12, %13 : vector<8x128xf32>
    %c0_12 = arith.constant 0 : index
    %c0_13 = arith.constant 0 : index
    %15 = vector.load %arg6[%c0_12, %c0_13] : memref<128x128xf32, #tpu.memory_space<vmem>>, vector<128x128xf32>
    %cst_14 = arith.constant dense<0.000000e+00> : vector<8x128xf32>
    %16 = tpu.matmul %14, %15, %cst_14 {dimension_numbers = #tpu.dot_dimension_numbers<[1], [0], [0], [1], [0, 0, 1, 1], [], []>} : vector<8x128xf32>, vector<128x128xf32>, vector<8x128xf32> -> vector<8x128xf32>
    %c0_15 = arith.constant 0 : index
    %c0_16 = arith.constant 0 : index
    %17 = vector.load %arg7[%c0_15, %c0_16] : memref<1x128xf32, #tpu.memory_space<vmem>>, vector<1x128xf32>
    %18 = vector.broadcast %17 : vector<1x128xf32> to vector<8x128xf32>
    %19 = arith.addf %16, %18 : vector<8x128xf32>
    %cst_17 = arith.constant 0.000000e+00 : f32
    %20 = vector.broadcast %cst_17 : f32 to vector<8x128xf32>
    %21 = arith.maximumf %19, %20 : vector<8x128xf32>
    %c0_18 = arith.constant 0 : index
    %c0_19 = arith.constant 0 : index
    %22 = vector.load %arg8[%c0_18, %c0_19] : memref<128x128xf32, #tpu.memory_space<vmem>>, vector<128x128xf32>
    %cst_20 = arith.constant dense<0.000000e+00> : vector<8x128xf32>
    %23 = tpu.matmul %21, %22, %cst_20 {dimension_numbers = #tpu.dot_dimension_numbers<[1], [0], [0], [1], [0, 0, 1, 1], [], []>} : vector<8x128xf32>, vector<128x128xf32>, vector<8x128xf32> -> vector<8x128xf32>
    %c0_21 = arith.constant 0 : index
    %c0_22 = arith.constant 0 : index
    %24 = vector.load %arg9[%c0_21, %c0_22] : memref<1x128xf32, #tpu.memory_space<vmem>>, vector<1x128xf32>
    %25 = vector.broadcast %24 : vector<1x128xf32> to vector<8x128xf32>
    %26 = arith.addf %23, %25 : vector<8x128xf32>
    %27 = arith.negf %26 : vector<8x128xf32>
    %28 = math.exp %27 : vector<8x128xf32>
    %cst_23 = arith.constant 1.000000e+00 : f32
    %29 = vector.broadcast %cst_23 : f32 to vector<8x128xf32>
    %30 = arith.addf %29, %28 : vector<8x128xf32>
    %31 = arith.divf %29, %30 : vector<8x128xf32>
    %c0_24 = arith.constant 0 : index
    %c0_25 = arith.constant 0 : index
    %32 = vector.load %arg10[%c0_24, %c0_25] : memref<8x128xf32, #tpu.memory_space<vmem>>, vector<8x128xf32>
    tpu.vector_store %arg10[%c0_24, %c0_25], %31 {strides = array<i32>} : memref<8x128xf32, #tpu.memory_space<vmem>>, vector<8x128xf32>,
    return
  }
  func.func @transform_0(%arg0: i32) -> (i32, i32) {
    %c0_i32 = arith.constant 0 : i32
    %c0_i32_0 = arith.constant 0 : i32
    return %arg0, %c0_i32 : i32, i32
  }
  func.func @transform_1(%arg0: i32) -> (i32, i32) {
    %c0_i32 = arith.constant 0 : i32
    %c0_i32_0 = arith.constant 0 : i32
    %c0_i32_1 = arith.constant 0 : i32
    return %c0_i32, %c0_i32_0 : i32, i32
  }
  func.func @transform_2(%arg0: i32) -> (i32, i32) {
    %c0_i32 = arith.constant 0 : i32
    %c0_i32_0 = arith.constant 0 : i32
    %c0_i32_1 = arith.constant 0 : i32
    return %c0_i32, %c0_i32_0 : i32, i32
  }
  func.func @transform_3(%arg0: i32) -> (i32, i32) {
    %c0_i32 = arith.constant 0 : i32
    %c0_i32_0 = arith.constant 0 : i32
    %c0_i32_1 = arith.constant 0 : i32
    return %c0_i32, %c0_i32_0 : i32, i32
  }
  func.func @transform_4(%arg0: i32) -> (i32, i32) {
    %c0_i32 = arith.constant 0 : i32
    %c0_i32_0 = arith.constant 0 : i32
    %c0_i32_1 = arith.constant 0 : i32
    return %c0_i32, %c0_i32_0 : i32, i32
  }
  func.func @transform_5(%arg0: i32) -> (i32, i32) {
    %c0_i32 = arith.constant 0 : i32
    %c0_i32_0 = arith.constant 0 : i32
    %c0_i32_1 = arith.constant 0 : i32
    return %c0_i32, %c0_i32_0 : i32, i32
  }
  func.func @transform_6(%arg0: i32) -> (i32, i32) {
    %c0_i32 = arith.constant 0 : i32
    %c0_i32_0 = arith.constant 0 : i32
    %c0_i32_1 = arith.constant 0 : i32
    return %c0_i32, %c0_i32_0 : i32, i32
  }
  func.func @transform_7(%arg0: i32) -> (i32, i32) {
    %c0_i32 = arith.constant 0 : i32
    %c0_i32_0 = arith.constant 0 : i32
    %c0_i32_1 = arith.constant 0 : i32
    return %c0_i32, %c0_i32_0 : i32, i32
  }
  func.func @transform_8(%arg0: i32) -> (i32, i32) {
    %c0_i32 = arith.constant 0 : i32
    %c0_i32_0 = arith.constant 0 : i32
    %c0_i32_1 = arith.constant 0 : i32
    return %c0_i32, %c0_i32_0 : i32, i32
  }
  func.func @transform_9(%arg0: i32) -> (i32, i32) {
    %c0_i32 = arith.constant 0 : i32
    %c0_i32_0 = arith.constant 0 : i32
    return %arg0, %c0_i32 : i32, i32
  }
}

</mosaic_0001>

<llo_original>
// kernel: _discriminator_probs_impl.1
$region0: #{_discriminator_probs_impl.1}
  #allocation0 [shape = 'u32[]', space=smem, size = 0x4, offset = 0x4, fixed_abs, tag = 'smem constant byte address 0x4 - core index']
  #allocation1 [shape = 'u32[144,128]{1,0:T(1,128)}', space=vmem, size = 0x12000, scoped, tag = 'internal scratch']
  %s0 = inlined_call_operand.vmem [shape: f32[8,128], index: 0, kind: input, shape index: {}]
  %s1 = inlined_call_operand.vmem [shape: f32[128,128], index: 1, kind: input, shape index: {}]
  %s2 = inlined_call_operand.vmem [shape: f32[1,128], index: 2, kind: input, shape index: {}]
  %s3 = inlined_call_operand.vmem [shape: f32[128,128], index: 3, kind: input, shape index: {}]
  %s4 = inlined_call_operand.vmem [shape: f32[1,128], index: 4, kind: input, shape index: {}]
  %s5 = inlined_call_operand.vmem [shape: f32[128,128], index: 5, kind: input, shape index: {}]
  %s6 = inlined_call_operand.vmem [shape: f32[1,128], index: 6, kind: input, shape index: {}]
  %s7 = inlined_call_operand.vmem [shape: f32[128,128], index: 7, kind: input, shape index: {}]
  %s8 = inlined_call_operand.vmem [shape: f32[1,128], index: 8, kind: input, shape index: {}]
  %s9 = inlined_call_operand.vmem [shape: f32[8,128], index: 9, kind: output, shape index: {}]
  %s10 = sld [smem:[#allocation0]]
  $region46: #{_discriminator_probs_impl.1} parent=0
    _
  %s12 = ssub.s32 1, %s10
  %s13 = scalar_select 0, %s12, %s10
  // Predicated region
  $region2: #{_discriminator_probs_impl.1} parent=0 // pred_check
    _
  $region3: #{_discriminator_probs_impl.1} parent=0 // pred_check_branch
    %15 = sbr.rel (0) target = $region5
  $region4: #{_discriminator_probs_impl.1} parent=0 // pred_region
    _
  $region5: #{_discriminator_probs_impl.1} parent=0 // pred_fallthru
    _
  // Predicated region
  $region6: #{_discriminator_probs_impl.1} parent=0 // pred_check
    _
  $region7: #{_discriminator_probs_impl.1} parent=0 // pred_check_branch
    %17 = sbr.rel (0) target = $region9
  $region8: #{_discriminator_probs_impl.1} parent=0 // pred_region
    _
  $region9: #{_discriminator_probs_impl.1} parent=0 // pred_fallthru
    _
  // Predicated region
  $region10: #{_discriminator_probs_impl.1} parent=0 // pred_check
    _
  $region11: #{_discriminator_probs_impl.1} parent=0 // pred_check_branch
    %19 = sbr.rel (0) target = $region13
  $region12: #{_discriminator_probs_impl.1} parent=0 // pred_region
    _
  $region13: #{_discriminator_probs_impl.1} parent=0 // pred_fallthru
    _
  // Predicated region
  $region14: #{_discriminator_probs_impl.1} parent=0 // pred_check
    _
  $region15: #{_discriminator_probs_impl.1} parent=0 // pred_check_branch
    %21 = sbr.rel (0) target = $region17
  $region16: #{_discriminator_probs_impl.1} parent=0 // pred_region
    _
  $region17: #{_discriminator_probs_impl.1} parent=0 // pred_fallthru
    _
  // Predicated region
  $region18: #{_discriminator_probs_impl.1} parent=0 // pred_check
    _
  $region19: #{_discriminator_probs_impl.1} parent=0 // pred_check_branch
    %23 = sbr.rel (0) target = $region21
  $region20: #{_discriminator_probs_impl.1} parent=0 // pred_region
    _
  $region21: #{_discriminator_probs_impl.1} parent=0 // pred_fallthru
    _
  // Predicated region
  $region22: #{_discriminator_probs_impl.1} parent=0 // pred_check
    _
  $region23: #{_discriminator_probs_impl.1} parent=0 // pred_check_branch
    %25 = sbr.rel (0) target = $region25
  $region24: #{_discriminator_probs_impl.1} parent=0 // pred_region
    _
  $region25: #{_discriminator_probs_impl.1} parent=0 // pred_fallthru
    _
  // Predicated region
  $region26: #{_discriminator_probs_impl.1} parent=0 // pred_check
    _
  $region27: #{_discriminator_probs_impl.1} parent=0 // pred_check_branch
    %27 = sbr.rel (0) target = $region29
  $region28: #{_discriminator_probs_impl.1} parent=0 // pred_region
    _
  $region29: #{_discriminator_probs_impl.1} parent=0 // pred_fallthru
    _
  // Predicated region
  $region30: #{_discriminator_probs_impl.1} parent=0 // pred_check
    _
  $region31: #{_discriminator_probs_impl.1} parent=0 // pred_check_branch
    %29 = sbr.rel (0) target = $region33
  $region32: #{_discriminator_probs_impl.1} parent=0 // pred_region
    _
  $region33: #{_discriminator_probs_impl.1} parent=0 // pred_fallthru
    _
  // Predicated region
  $region34: #{_discriminator_probs_impl.1} parent=0 // pred_check
    _
  $region35: #{_discriminator_probs_impl.1} parent=0 // pred_check_branch
    %31 = sbr.rel (0) target = $region37
  $region36: #{_discriminator_probs_impl.1} parent=0 // pred_region
    _
  $region37: #{_discriminator_probs_impl.1} parent=0 // pred_fallthru
    _
  %v32 = vld [vmem:[%s0] sm:$0xff]
  %v33 = vld [vmem:[%s1] sm:$0xff]
  %v34 = vld [vmem:[%s1 + $0x8] sm:$0xff]
  %v35 = vld [vmem:[%s1 + $0x10] sm:$0xff]
  %v36 = vld [vmem:[%s1 + $0x18] sm:$0xff]
  %v37 = vld [vmem:[%s1 + $0x20] sm:$0xff]
  %v38 = vld [vmem:[%s1 + $0x28] sm:$0xff]
  %v39 = vld [vmem:[%s1 + $0x30] sm:$0xff]
  %v40 = vld [vmem:[%s1 + $0x38] sm:$0xff]
  %v41 = vld [vmem:[%s1 + $0x40] sm:$0xff]
  %v42 = vld [vmem:[%s1 + $0x48] sm:$0xff]
  %v43 = vld [vmem:[%s1 + $0x50] sm:$0xff]
  %v44 = vld [vmem:[%s1 + $0x58] sm:$0xff]
  %v45 = vld [vmem:[%s1 + $0x60] sm:$0xff]
  %v46 = vld [vmem:[%s1 + $0x68] sm:$0xff]
  %v47 = vld [vmem:[%s1 + $0x70] sm:$0xff]
  %v48 = vld [vmem:[%s1 + $0x78] sm:$0xff]
  %v49 = vld [vmem:[%s2] sm:$0x1]
  %v51 = vlaneseq
  %v52 = vshrl.u32 %v51, 7
  %v53 = vsub.s32 0, %v52
  %v54 = vrot.slane %v49, %v53
  %56 = vmatprep.subr.mxu0 0.0
  %57 = vmatpush1.msra.mxu0 %v33
  %58 = vmatprep.subr.mxu0 0.0
  %59 = vmatpush1.msra.mxu0 %v34
  %60 = vmatprep.subr.mxu0 0.0
  %61 = vmatpush1.msra.mxu0 %v35
  %62 = vmatprep.subr.mxu0 0.0
  %63 = vmatpush1.msra.mxu0 %v36
  %64 = vmatprep.subr.mxu0 0.0
  %65 = vmatpush1.msra.mxu0 %v37
  %66 = vmatprep.subr.mxu0 0.0
  %67 = vmatpush1.msra.mxu0 %v38
  %68 = vmatprep.subr.mxu0 0.0
  %69 = vmatpush1.msra.mxu0 %v39
  %70 = vmatprep.subr.mxu0 0.0
  %71 = vmatpush1.msra.mxu0 %v40
  %72 = vmatprep.subr.mxu0 0.0
  %73 = vmatpush1.msra.mxu0 %v41
  %74 = vmatprep.subr.mxu0 0.0
  %75 = vmatpush1.msra.mxu0 %v42
  %76 = vmatprep.subr.mxu0 0.0
  %77 = vmatpush1.msra.mxu0 %v43
  %78 = vmatprep.subr.mxu0 0.0
  %79 = vmatpush1.msra.mxu0 %v44
  %80 = vmatprep.subr.mxu0 0.0
  %81 = vmatpush1.msra.mxu0 %v45
  %82 = vmatprep.subr.mxu0 0.0
  %83 = vmatpush1.msra.mxu0 %v46
  %84 = vmatprep.subr.mxu0 0.0
  %85 = vmatpush1.msra.mxu0 %v47
  %86 = vmatprep.subr.mxu0 0.0
  %87 = vmatpush1.msra.mxu0 %v48
  %88 = vmatprep.subr.mxu0 0.0
  %89 = vmatpush1.msra.mxu0 0.0
  %90 = vmatprep.subr.mxu0 0.0
  %91 = vmatpush1.msra.mxu0 0.0
  %92 = vmatprep.subr.mxu0 0.0
  %93 = vmatpush1.msra.mxu0 0.0
  %94 = vmatprep.subr.mxu0 0.0
  %95 = vmatpush1.msra.mxu0 0.0
  %96 = vmatprep.subr.mxu0 0.0
  %97 = vmatpush1.msra.mxu0 0.0
  %98 = vmatprep.subr.mxu0 0.0
  %99 = vmatpush1.msra.mxu0 0.0
  %100 = vmatprep.subr.mxu0 0.0
  %101 = vmatpush1.msra.mxu0 0.0
  %102 = vmatprep.subr.mxu0 0.0
  %103 = vmatpush1.msra.mxu0 0.0
  %104 = vmatprep.subr.mxu0 0.0
  %105 = vmatpush1.msra.mxu0 0.0
  %106 = vmatprep.subr.mxu0 0.0
  %107 = vmatpush1.msra.mxu0 0.0
  %108 = vmatprep.subr.mxu0 0.0
  %109 = vmatpush1.msra.mxu0 0.0
  %110 = vmatprep.subr.mxu0 0.0
  %111 = vmatpush1.msra.mxu0 0.0
  %112 = vmatprep.subr.mxu0 0.0
  %113 = vmatpush1.msra.mxu0 0.0
  %114 = vmatprep.subr.mxu0 0.0
  %115 = vmatpush1.msra.mxu0 0.0
  %116 = vmatprep.subr.mxu0 0.0
  %117 = vmatpush1.msra.mxu0 0.0
  %118 = vmatprep.subr.mxu0 0.0
  %119 = vmatpush1.msra.mxu0 0.0
  %120 = vmatprep.mubr.f32.mxu0 0.0
  %121 = vmatmul.mubr.f32.gmra.mrb[0].mxu0 %v32
  %v122 = vpop.f32.mrb[0].mxu0
  %v123 = vadd.f32 %v54, %v122
  %v124 = vpop.f32.mrb[0].mxu0
  %125 = vdwg.mxu0
  %v126 = vmax.f32 %v123, 0.0
  %v127 = vld [vmem:[%s3] sm:$0xff]
  %v128 = vld [vmem:[%s3 + $0x8] sm:$0xff]
  %v129 = vld [vmem:[%s3 + $0x10] sm:$0xff]
  %v130 = vld [vmem:[%s3 + $0x18] sm:$0xff]
  %v131 = vld [vmem:[%s3 + $0x20] sm:$0xff]
  %v132 = vld [vmem:[%s3 + $0x28] sm:$0xff]
  %v133 = vld [vmem:[%s3 + $0x30] sm:$0xff]
  %v134 = vld [vmem:[%s3 + $0x38] sm:$0xff]
  %v135 = vld [vmem:[%s3 + $0x40] sm:$0xff]
  %v136 = vld [vmem:[%s3 + $0x48] sm:$0xff]
  %v137 = vld [vmem:[%s3 + $0x50] sm:$0xff]
  %v138 = vld [vmem:[%s3 + $0x58] sm:$0xff]
  %v139 = vld [vmem:[%s3 + $0x60] sm:$0xff]
  %v140 = vld [vmem:[%s3 + $0x68] sm:$0xff]
  %v141 = vld [vmem:[%s3 + $0x70] sm:$0xff]
  %v142 = vld [vmem:[%s3 + $0x78] sm:$0xff]
  %v143 = vld [vmem:[%s4] sm:$0x1]
  %v145 = vlaneseq
  %v146 = vshrl.u32 %v145, 7
  %v147 = vsub.s32 0, %v146
  %v148 = vrot.slane %v143, %v147
  %150 = vmatprep.subr.mxu0 0.0
  %151 = vmatpush1.msra.mxu0 %v127
  %152 = vmatprep.subr.mxu0 0.0
  %153 = vmatpush1.msra.mxu0 %v128
  %154 = vmatprep.subr.mxu0 0.0
  %155 = vmatpush1.msra.mxu0 %v129
  %156 = vmatprep.subr.mxu0 0.0
  %157 = vmatpush1.msra.mxu0 %v130
  %158 = vmatprep.subr.mxu0 0.0
  %159 = vmatpush1.msra.mxu0 %v131
  %160 = vmatprep.subr.mxu0 0.0
  %161 = vmatpush1.msra.mxu0 %v132
  %162 = vmatprep.subr.mxu0 0.0
  %163 = vmatpush1.msra.mxu0 %v133
  %164 = vmatprep.subr.mxu0 0.0
  %165 = vmatpush1.msra.mxu0 %v134
  %166 = vmatprep.subr.mxu0 0.0
  %167 = vmatpush1.msra.mxu0 %v135
  %168 = vmatprep.subr.mxu0 0.0
  %169 = vmatpush1.msra.mxu0 %v136
  %170 = vmatprep.subr.mxu0 0.0
  %171 = vmatpush1.msra.mxu0 %v137
  %172 = vmatprep.subr.mxu0 0.0
  %173 = vmatpush1.msra.mxu0 %v138
  %174 = vmatprep.subr.mxu0 0.0
  %175 = vmatpush1.msra.mxu0 %v139
  %176 = vmatprep.subr.mxu0 0.0
  %177 = vmatpush1.msra.mxu0 %v140
  %178 = vmatprep.subr.mxu0 0.0
  %179 = vmatpush1.msra.mxu0 %v141
  %180 = vmatprep.subr.mxu0 0.0
  %181 = vmatpush1.msra.mxu0 %v142
  %182 = vmatprep.subr.mxu0 0.0
  %183 = vmatpush1.msra.mxu0 0.0
  %184 = vmatprep.subr.mxu0 0.0
  %185 = vmatpush1.msra.mxu0 0.0
  %186 = vmatprep.subr.mxu0 0.0
  %187 = vmatpush1.msra.mxu0 0.0
  %188 = vmatprep.subr.mxu0 0.0
  %189 = vmatpush1.msra.mxu0 0.0
  %190 = vmatprep.subr.mxu0 0.0
  %191 = vmatpush1.msra.mxu0 0.0
  %192 = vmatprep.subr.mxu0 0.0
  %193 = vmatpush1.msra.mxu0 0.0
  %194 = vmatprep.subr.mxu0 0.0
  %195 = vmatpush1.msra.mxu0 0.0
  %196 = vmatprep.subr.mxu0 0.0
  %197 = vmatpush1.msra.mxu0 0.0
  %198 = vmatprep.subr.mxu0 0.0
  %199 = vmatpush1.msra.mxu0 0.0
  %200 = vmatprep.subr.mxu0 0.0
  %201 = vmatpush1.msra.mxu0 0.0
  %202 = vmatprep.subr.mxu0 0.0
  %203 = vmatpush1.msra.mxu0 0.0
  %204 = vmatprep.subr.mxu0 0.0
  %205 = vmatpush1.msra.mxu0 0.0
  %206 = vmatprep.subr.mxu0 0.0
  %207 = vmatpush1.msra.mxu0 0.0
  %208 = vmatprep.subr.mxu0 0.0
  %209 = vmatpush1.msra.mxu0 0.0
  %210 = vmatprep.subr.mxu0 0.0
  %211 = vmatpush1.msra.mxu0 0.0
  %212 = vmatprep.subr.mxu0 0.0
  %213 = vmatpush1.msra.mxu0 0.0
  %214 = vmatprep.mubr.f32.mxu0 0.0
  %215 = vmatmul.mubr.f32.gmra.mrb[0].mxu0 %v126
  %v216 = vpop.f32.mrb[0].mxu0
  %v217 = vadd.f32 %v148, %v216
  %v218 = vpop.f32.mrb[0].mxu0
  %219 = vdwg.mxu0
  %v220 = vmax.f32 %v217, 0.0
  %v221 = vld [vmem:[%s5] sm:$0xff]
  %v222 = vld [vmem:[%s5 + $0x8] sm:$0xff]
  %v223 = vld [vmem:[%s5 + $0x10] sm:$0xff]
  %v224 = vld [vmem:[%s5 + $0x18] sm:$0xff]
  %v225 = vld [vmem:[%s5 + $0x20] sm:$0xff]
  %v226 = vld [vmem:[%s5 + $0x28] sm:$0xff]
  %v227 = vld [vmem:[%s5 + $0x30] sm:$0xff]
  %v228 = vld [vmem:[%s5 + $0x38] sm:$0xff]
  %v229 = vld [vmem:[%s5 + $0x40] sm:$0xff]
  %v230 = vld [vmem:[%s5 + $0x48] sm:$0xff]
  %v231 = vld [vmem:[%s5 + $0x50] sm:$0xff]
  %v232 = vld [vmem:[%s5 + $0x58] sm:$0xff]
  %v233 = vld [vmem:[%s5 + $0x60] sm:$0xff]
  %v234 = vld [vmem:[%s5 + $0x68] sm:$0xff]
  %v235 = vld [vmem:[%s5 + $0x70] sm:$0xff]
  %v236 = vld [vmem:[%s5 + $0x78] sm:$0xff]
  %v237 = vld [vmem:[%s6] sm:$0x1]
  %v239 = vlaneseq
  %v240 = vshrl.u32 %v239, 7
  %v241 = vsub.s32 0, %v240
  %v242 = vrot.slane %v237, %v241
  %244 = vmatprep.subr.mxu0 0.0
  %245 = vmatpush1.msra.mxu0 %v221
  %246 = vmatprep.subr.mxu0 0.0
  %247 = vmatpush1.msra.mxu0 %v222
  %248 = vmatprep.subr.mxu0 0.0
  %249 = vmatpush1.msra.mxu0 %v223
  %250 = vmatprep.subr.mxu0 0.0
  %251 = vmatpush1.msra.mxu0 %v224
  %252 = vmatprep.subr.mxu0 0.0
  %253 = vmatpush1.msra.mxu0 %v225
  %254 = vmatprep.subr.mxu0 0.0
  %255 = vmatpush1.msra.mxu0 %v226
  %256 = vmatprep.subr.mxu0 0.0
  %257 = vmatpush1.msra.mxu0 %v227
  %258 = vmatprep.subr.mxu0 0.0
  %259 = vmatpush1.msra.mxu0 %v228
  %260 = vmatprep.subr.mxu0 0.0
  %261 = vmatpush1.msra.mxu0 %v229
  %262 = vmatprep.subr.mxu0 0.0
  %263 = vmatpush1.msra.mxu0 %v230
  %264 = vmatprep.subr.mxu0 0.0
  %265 = vmatpush1.msra.mxu0 %v231
  %266 = vmatprep.subr.mxu0 0.0
  %267 = vmatpush1.msra.mxu0 %v232
  %268 = vmatprep.subr.mxu0 0.0
  %269 = vmatpush1.msra.mxu0 %v233
  %270 = vmatprep.subr.mxu0 0.0
  %271 = vmatpush1.msra.mxu0 %v234
  %272 = vmatprep.subr.mxu0 0.0
  %273 = vmatpush1.msra.mxu0 %v235
  %274 = vmatprep.subr.mxu0 0.0
  %275 = vmatpush1.msra.mxu0 %v236
  %276 = vmatprep.subr.mxu0 0.0
  %277 = vmatpush1.msra.mxu0 0.0
  %278 = vmatprep.subr.mxu0 0.0
  %279 = vmatpush1.msra.mxu0 0.0
  %280 = vmatprep.subr.mxu0 0.0
  %281 = vmatpush1.msra.mxu0 0.0
  %282 = vmatprep.subr.mxu0 0.0
  %283 = vmatpush1.msra.mxu0 0.0
  %284 = vmatprep.subr.mxu0 0.0
  %285 = vmatpush1.msra.mxu0 0.0
  %286 = vmatprep.subr.mxu0 0.0
  %287 = vmatpush1.msra.mxu0 0.0
  %288 = vmatprep.subr.mxu0 0.0
  %289 = vmatpush1.msra.mxu0 0.0
  %290 = vmatprep.subr.mxu0 0.0
  %291 = vmatpush1.msra.mxu0 0.0
  %292 = vmatprep.subr.mxu0 0.0
  %293 = vmatpush1.msra.mxu0 0.0
  %294 = vmatprep.subr.mxu0 0.0
  %295 = vmatpush1.msra.mxu0 0.0
  %296 = vmatprep.subr.mxu0 0.0
  %297 = vmatpush1.msra.mxu0 0.0
  %298 = vmatprep.subr.mxu0 0.0
  %299 = vmatpush1.msra.mxu0 0.0
  %300 = vmatprep.subr.mxu0 0.0
  %301 = vmatpush1.msra.mxu0 0.0
  %302 = vmatprep.subr.mxu0 0.0
  %303 = vmatpush1.msra.mxu0 0.0
  %304 = vmatprep.subr.mxu0 0.0
  %305 = vmatpush1.msra.mxu0 0.0
  %306 = vmatprep.subr.mxu0 0.0
  %307 = vmatpush1.msra.mxu0 0.0
  %308 = vmatprep.mubr.f32.mxu0 0.0
  %309 = vmatmul.mubr.f32.gmra.mrb[0].mxu0 %v220
  %v310 = vpop.f32.mrb[0].mxu0
  %v311 = vadd.f32 %v242, %v310
  %v312 = vpop.f32.mrb[0].mxu0
  %313 = vdwg.mxu0
  %v314 = vmax.f32 %v311, 0.0
  %v315 = vld [vmem:[%s7] sm:$0xff]
  %v316 = vld [vmem:[%s7 + $0x8] sm:$0xff]
  %v317 = vld [vmem:[%s7 + $0x10] sm:$0xff]
  %v318 = vld [vmem:[%s7 + $0x18] sm:$0xff]
  %v319 = vld [vmem:[%s7 + $0x20] sm:$0xff]
  %v320 = vld [vmem:[%s7 + $0x28] sm:$0xff]
  %v321 = vld [vmem:[%s7 + $0x30] sm:$0xff]
  %v322 = vld [vmem:[%s7 + $0x38] sm:$0xff]
  %v323 = vld [vmem:[%s7 + $0x40] sm:$0xff]
  %v324 = vld [vmem:[%s7 + $0x48] sm:$0xff]
  %v325 = vld [vmem:[%s7 + $0x50] sm:$0xff]
  %v326 = vld [vmem:[%s7 + $0x58] sm:$0xff]
  %v327 = vld [vmem:[%s7 + $0x60] sm:$0xff]
  %v328 = vld [vmem:[%s7 + $0x68] sm:$0xff]
  %v329 = vld [vmem:[%s7 + $0x70] sm:$0xff]
  %v330 = vld [vmem:[%s7 + $0x78] sm:$0xff]
  %v331 = vld [vmem:[%s8] sm:$0x1]
  %v333 = vlaneseq
  %v334 = vshrl.u32 %v333, 7
  %v335 = vsub.s32 0, %v334
  %v336 = vrot.slane %v331, %v335
  %338 = vmatprep.subr.mxu0 0.0
  %339 = vmatpush1.msra.mxu0 %v315
  %340 = vmatprep.subr.mxu0 0.0
  %341 = vmatpush1.msra.mxu0 %v316
  %342 = vmatprep.subr.mxu0 0.0
  %343 = vmatpush1.msra.mxu0 %v317
  %344 = vmatprep.subr.mxu0 0.0
  %345 = vmatpush1.msra.mxu0 %v318
  %346 = vmatprep.subr.mxu0 0.0
  %347 = vmatpush1.msra.mxu0 %v319
  %348 = vmatprep.subr.mxu0 0.0
  %349 = vmatpush1.msra.mxu0 %v320
  %350 = vmatprep.subr.mxu0 0.0
  %351 = vmatpush1.msra.mxu0 %v321
  %352 = vmatprep.subr.mxu0 0.0
  %353 = vmatpush1.msra.mxu0 %v322
  %354 = vmatprep.subr.mxu0 0.0
  %355 = vmatpush1.msra.mxu0 %v323
  %356 = vmatprep.subr.mxu0 0.0
  %357 = vmatpush1.msra.mxu0 %v324
  %358 = vmatprep.subr.mxu0 0.0
  %359 = vmatpush1.msra.mxu0 %v325
  %360 = vmatprep.subr.mxu0 0.0
  %361 = vmatpush1.msra.mxu0 %v326
  %362 = vmatprep.subr.mxu0 0.0
  %363 = vmatpush1.msra.mxu0 %v327
  %364 = vmatprep.subr.mxu0 0.0
  %365 = vmatpush1.msra.mxu0 %v328
  %366 = vmatprep.subr.mxu0 0.0
  %367 = vmatpush1.msra.mxu0 %v329
  %368 = vmatprep.subr.mxu0 0.0
  %369 = vmatpush1.msra.mxu0 %v330
  %370 = vmatprep.subr.mxu0 0.0
  %371 = vmatpush1.msra.mxu0 0.0
  %372 = vmatprep.subr.mxu0 0.0
  %373 = vmatpush1.msra.mxu0 0.0
  %374 = vmatprep.subr.mxu0 0.0
  %375 = vmatpush1.msra.mxu0 0.0
  %376 = vmatprep.subr.mxu0 0.0
  %377 = vmatpush1.msra.mxu0 0.0
  %378 = vmatprep.subr.mxu0 0.0
  %379 = vmatpush1.msra.mxu0 0.0
  %380 = vmatprep.subr.mxu0 0.0
  %381 = vmatpush1.msra.mxu0 0.0
  %382 = vmatprep.subr.mxu0 0.0
  %383 = vmatpush1.msra.mxu0 0.0
  %384 = vmatprep.subr.mxu0 0.0
  %385 = vmatpush1.msra.mxu0 0.0
  %386 = vmatprep.subr.mxu0 0.0
  %387 = vmatpush1.msra.mxu0 0.0
  %388 = vmatprep.subr.mxu0 0.0
  %389 = vmatpush1.msra.mxu0 0.0
  %390 = vmatprep.subr.mxu0 0.0
  %391 = vmatpush1.msra.mxu0 0.0
  %392 = vmatprep.subr.mxu0 0.0
  %393 = vmatpush1.msra.mxu0 0.0
  %394 = vmatprep.subr.mxu0 0.0
  %395 = vmatpush1.msra.mxu0 0.0
  %396 = vmatprep.subr.mxu0 0.0
  %397 = vmatpush1.msra.mxu0 0.0
  %398 = vmatprep.subr.mxu0 0.0
  %399 = vmatpush1.msra.mxu0 0.0
  %400 = vmatprep.subr.mxu0 0.0
  %401 = vmatpush1.msra.mxu0 0.0
  %402 = vmatprep.mubr.f32.mxu0 0.0
  %403 = vmatmul.mubr.f32.gmra.mrb[0].mxu0 %v314
  %v404 = vpop.f32.mrb[0].mxu0
  %v405 = vadd.f32 %v336, %v404
  %v406 = vpop.f32.mrb[0].mxu0
  %407 = vdwg.mxu0
  %v408 = vxor.u32 %v405, 2147483648
  %v409 = vmul.f32 %v408, 1.442695
  %v410 = vpow.pop %v409
  %v411 = vadd.f32 %v410, 1.0
  %v412 = vrcp.pop %v411
  %v413 = vmul.f32 1.0, %v412
  %414 = vst [vmem:[%s9] sm:$0xff] %v413
  // Predicated region
  $region38: #{_discriminator_probs_impl.1} parent=0 // pred_check
    _
  $region39: #{_discriminator_probs_impl.1} parent=0 // pred_check_branch
    %416 = sbr.rel (0) target = $region41
  $region40: #{_discriminator_probs_impl.1} parent=0 // pred_region
    _
  $region41: #{_discriminator_probs_impl.1} parent=0 // pred_fallthru
    _
  // Predicated region
  $region42: #{_discriminator_probs_impl.1} parent=0 // pred_check
    _
  $region43: #{_discriminator_probs_impl.1} parent=0 // pred_check_branch
    %418 = sbr.rel (0) target = $region45
  $region44: #{_discriminator_probs_impl.1} parent=0 // pred_region
    _
  $region45: #{_discriminator_probs_impl.1} parent=0 // pred_fallthru
    _

// kernel: _discriminator_probs_impl.1
$region0: #{_discriminator_probs_impl.1}
  #allocation0 [shape = 'u32[]', space=smem, size = 0x4, offset = 0x4, fixed_abs, tag = 'smem constant byte address 0x4 - core index']
  #allocation1 [shape = 'u32[144,128]{1,0:T(1,128)}', space=vmem, size = 0x12000, scoped, tag = 'internal scratch']
  %s0 = inlined_call_operand.vmem [shape: f32[8,128], index: 0, kind: input, shape index: {}]
  %s1 = inlined_call_operand.vmem [shape: f32[128,128], index: 1, kind: input, shape index: {}]
  %s2 = inlined_call_operand.vmem [shape: f32[1,128], index: 2, kind: input, shape index: {}]
  %s3 = inlined_call_operand.vmem [shape: f32[128,128], index: 3, kind: input, shape index: {}]
  %s4 = inlined_call_operand.vmem [shape: f32[1,128], index: 4, kind: input, shape index: {}]
  %s5 = inlined_call_operand.vmem [shape: f32[128,128], index: 5, kind: input, shape index: {}]
  %s6 = inlined_call_operand.vmem [shape: f32[1,128], index: 6, kind: input, shape index: {}]
  %s7 = inlined_call_operand.vmem [shape: f32[128,128], index: 7, kind: input, shape index: {}]
  %s8 = inlined_call_operand.vmem [shape: f32[1,128], index: 8, kind: input, shape index: {}]
  %s9 = inlined_call_operand.vmem [shape: f32[8,128], index: 9, kind: output, shape index: {}]
  %s10 = sld [smem:[#allocation0]]
  $region46: #{_discriminator_probs_impl.1} parent=0
    _
  %s12 = ssub.s32 1, %s10
  %s13 = scalar_select 0, %s12, %s10
  // Predicated region
  $region2: #{_discriminator_probs_impl.1} parent=0 // pred_check
    _
  $region3: #{_discriminator_probs_impl.1} parent=0 // pred_check_branch
    %15 = sbr.rel (0) target = $region5
  $region4: #{_discriminator_probs_impl.1} parent=0 // pred_region
    _
  $region5: #{_discriminator_probs_impl.1} parent=0 // pred_fallthru
    _
  // Predicated region
  $region6: #{_discriminator_probs_impl.1} parent=0 // pred_check
    _
  $region7: #{_discriminator_probs_impl.1} parent=0 // pred_check_branch
    %17 = sbr.rel (0) target = $region9
  $region8: #{_discriminator_probs_impl.1} parent=0 // pred_region
    _
  $region9: #{_discriminator_probs_impl.1} parent=0 // pred_fallthru
    _
  // Predicated region
  $region10: #{_discriminator_probs_impl.1} parent=0 // pred_check
    _
  $region11: #{_discriminator_probs_impl.1} parent=0 // pred_check_branch
    %19 = sbr.rel (0) target = $region13
  $region12: #{_discriminator_probs_impl.1} parent=0 // pred_region
    _
  $region13: #{_discriminator_probs_impl.1} parent=0 // pred_fallthru
    _
  // Predicated region
  $region14: #{_discriminator_probs_impl.1} parent=0 // pred_check
    _
  $region15: #{_discriminator_probs_impl.1} parent=0 // pred_check_branch
    %21 = sbr.rel (0) target = $region17
  $region16: #{_discriminator_probs_impl.1} parent=0 // pred_region
    _
  $region17: #{_discriminator_probs_impl.1} parent=0 // pred_fallthru
    _
  // Predicated region
  $region18: #{_discriminator_probs_impl.1} parent=0 // pred_check
    _
  $region19: #{_discriminator_probs_impl.1} parent=0 // pred_check_branch
    %23 = sbr.rel (0) target = $region21
  $region20: #{_discriminator_probs_impl.1} parent=0 // pred_region
    _
  $region21: #{_discriminator_probs_impl.1} parent=0 // pred_fallthru
    _
  // Predicated region
  $region22: #{_discriminator_probs_impl.1} parent=0 // pred_check
    _
  $region23: #{_discriminator_probs_impl.1} parent=0 // pred_check_branch
    %25 = sbr.rel (0) target = $region25
  $region24: #{_discriminator_probs_impl.1} parent=0 // pred_region
    _
  $region25: #{_discriminator_probs_impl.1} parent=0 // pred_fallthru
    _
  // Predicated region
  $region26: #{_discriminator_probs_impl.1} parent=0 // pred_check
    _
  $region27: #{_discriminator_probs_impl.1} parent=0 // pred_check_branch
    %27 = sbr.rel (0) target = $region29
  $region28: #{_discriminator_probs_impl.1} parent=0 // pred_region
    _
  $region29: #{_discriminator_probs_impl.1} parent=0 // pred_fallthru
    _
  // Predicated region
  $region30: #{_discriminator_probs_impl.1} parent=0 // pred_check
    _
  $region31: #{_discriminator_probs_impl.1} parent=0 // pred_check_branch
    %29 = sbr.rel (0) target = $region33
  $region32: #{_discriminator_probs_impl.1} parent=0 // pred_region
    _
  $region33: #{_discriminator_probs_impl.1} parent=0 // pred_fallthru
    _
  // Predicated region
  $region34: #{_discriminator_probs_impl.1} parent=0 // pred_check
    _
  $region35: #{_discriminator_probs_impl.1} parent=0 // pred_check_branch
    %31 = sbr.rel (0) target = $region37
  $region36: #{_discriminator_probs_impl.1} parent=0 // pred_region
    _
  $region37: #{_discriminator_probs_impl.1} parent=0 // pred_fallthru
    _
  %v32 = vld [vmem:[%s0] sm:$0xff]
  %v33 = vld [vmem:[%s1] sm:$0xff]
  %v34 = vld [vmem:[%s1 + $0x8] sm:$0xff]
  %v35 = vld [vmem:[%s1 + $0x10] sm:$0xff]
  %v36 = vld [vmem:[%s1 + $0x18] sm:$0xff]
  %v37 = vld [vmem:[%s1 + $0x20] sm:$0xff]
  %v38 = vld [vmem:[%s1 + $0x28] sm:$0xff]
  %v39 = vld [vmem:[%s1 + $0x30] sm:$0xff]
  %v40 = vld [vmem:[%s1 + $0x38] sm:$0xff]
  %v41 = vld [vmem:[%s1 + $0x40] sm:$0xff]
  %v42 = vld [vmem:[%s1 + $0x48] sm:$0xff]
  %v43 = vld [vmem:[%s1 + $0x50] sm:$0xff]
  %v44 = vld [vmem:[%s1 + $0x58] sm:$0xff]
  %v45 = vld [vmem:[%s1 + $0x60] sm:$0xff]
  %v46 = vld [vmem:[%s1 + $0x68] sm:$0xff]
  %v47 = vld [vmem:[%s1 + $0x70] sm:$0xff]
  %v48 = vld [vmem:[%s1 + $0x78] sm:$0xff]
  %v49 = vld [vmem:[%s2] sm:$0x1]
  %v51 = vlaneseq
  %v52 = vshrl.u32 %v51, 7
  %v53 = vsub.s32 0, %v52
  %v54 = vrot.slane %v49, %v53
  %56 = vmatprep.subr.mxu0 0.0
  %57 = vmatpush1.msra.mxu0 %v33
  %58 = vmatprep.subr.mxu0 0.0
  %59 = vmatpush1.msra.mxu0 %v34
  %60 = vmatprep.subr.mxu0 0.0
  %61 = vmatpush1.msra.mxu0 %v35
  %62 = vmatprep.subr.mxu0 0.0
  %63 = vmatpush1.msra.mxu0 %v36
  %64 = vmatprep.subr.mxu0 0.0
  %65 = vmatpush1.msra.mxu0 %v37
  %66 = vmatprep.subr.mxu0 0.0
  %67 = vmatpush1.msra.mxu0 %v38
  %68 = vmatprep.subr.mxu0 0.0
  %69 = vmatpush1.msra.mxu0 %v39
  %70 = vmatprep.subr.mxu0 0.0
  %71 = vmatpush1.msra.mxu0 %v40
  %72 = vmatprep.subr.mxu0 0.0
  %73 = vmatpush1.msra.mxu0 %v41
  %74 = vmatprep.subr.mxu0 0.0
  %75 = vmatpush1.msra.mxu0 %v42
  %76 = vmatprep.subr.mxu0 0.0
  %77 = vmatpush1.msra.mxu0 %v43
  %78 = vmatprep.subr.mxu0 0.0
  %79 = vmatpush1.msra.mxu0 %v44
  %80 = vmatprep.subr.mxu0 0.0
  %81 = vmatpush1.msra.mxu0 %v45
  %82 = vmatprep.subr.mxu0 0.0
  %83 = vmatpush1.msra.mxu0 %v46
  %84 = vmatprep.subr.mxu0 0.0
  %85 = vmatpush1.msra.mxu0 %v47
  %86 = vmatprep.subr.mxu0 0.0
  %87 = vmatpush1.msra.mxu0 %v48
  %88 = vmatprep.subr.mxu0 0.0
  %89 = vmatpush1.msra.mxu0 0.0
  %90 = vmatprep.subr.mxu0 0.0
  %91 = vmatpush1.msra.mxu0 0.0
  %92 = vmatprep.subr.mxu0 0.0
  %93 = vmatpush1.msra.mxu0 0.0
  %94 = vmatprep.subr.mxu0 0.0
  %95 = vmatpush1.msra.mxu0 0.0
  %96 = vmatprep.subr.mxu0 0.0
  %97 = vmatpush1.msra.mxu0 0.0
  %98 = vmatprep.subr.mxu0 0.0
  %99 = vmatpush1.msra.mxu0 0.0
  %100 = vmatprep.subr.mxu0 0.0
  %101 = vmatpush1.msra.mxu0 0.0
  %102 = vmatprep.subr.mxu0 0.0
  %103 = vmatpush1.msra.mxu0 0.0
  %104 = vmatprep.subr.mxu0 0.0
  %105 = vmatpush1.msra.mxu0 0.0
  %106 = vmatprep.subr.mxu0 0.0
  %107 = vmatpush1.msra.mxu0 0.0
  %108 = vmatprep.subr.mxu0 0.0
  %109 = vmatpush1.msra.mxu0 0.0
  %110 = vmatprep.subr.mxu0 0.0
  %111 = vmatpush1.msra.mxu0 0.0
  %112 = vmatprep.subr.mxu0 0.0
  %113 = vmatpush1.msra.mxu0 0.0
  %114 = vmatprep.subr.mxu0 0.0
  %115 = vmatpush1.msra.mxu0 0.0
  %116 = vmatprep.subr.mxu0 0.0
  %117 = vmatpush1.msra.mxu0 0.0
  %118 = vmatprep.subr.mxu0 0.0
  %119 = vmatpush1.msra.mxu0 0.0
  %120 = vmatprep.mubr.f32.mxu0 0.0
  %121 = vmatmul.mubr.f32.gmra.mrb[0].mxu0 %v32
  %v122 = vpop.f32.mrb[0].mxu0
  %v123 = vadd.f32 %v54, %v122
  %v124 = vpop.f32.mrb[0].mxu0
  %125 = vdwg.mxu0
  %v126 = vmax.f32 %v123, 0.0
  %v127 = vld [vmem:[%s3] sm:$0xff]
  %v128 = vld [vmem:[%s3 + $0x8] sm:$0xff]
  %v129 = vld [vmem:[%s3 + $0x10] sm:$0xff]
  %v130 = vld [vmem:[%s3 + $0x18] sm:$0xff]
  %v131 = vld [vmem:[%s3 + $0x20] sm:$0xff]
  %v132 = vld [vmem:[%s3 + $0x28] sm:$0xff]
  %v133 = vld [vmem:[%s3 + $0x30] sm:$0xff]
  %v134 = vld [vmem:[%s3 + $0x38] sm:$0xff]
  %v135 = vld [vmem:[%s3 + $0x40] sm:$0xff]
  %v136 = vld [vmem:[%s3 + $0x48] sm:$0xff]
  %v137 = vld [vmem:[%s3 + $0x50] sm:$0xff]
  %v138 = vld [vmem:[%s3 + $0x58] sm:$0xff]
  %v139 = vld [vmem:[%s3 + $0x60] sm:$0xff]
  %v140 = vld [vmem:[%s3 + $0x68] sm:$0xff]
  %v141 = vld [vmem:[%s3 + $0x70] sm:$0xff]
  %v142 = vld [vmem:[%s3 + $0x78] sm:$0xff]
  %v143 = vld [vmem:[%s4] sm:$0x1]
  %v145 = vlaneseq
  %v146 = vshrl.u32 %v145, 7
  %v147 = vsub.s32 0, %v146
  %v148 = vrot.slane %v143, %v147
  %150 = vmatprep.subr.mxu0 0.0
  %151 = vmatpush1.msra.mxu0 %v127
  %152 = vmatprep.subr.mxu0 0.0
  %153 = vmatpush1.msra.mxu0 %v128
  %154 = vmatprep.subr.mxu0 0.0
  %155 = vmatpush1.msra.mxu0 %v129
  %156 = vmatprep.subr.mxu0 0.0
  %157 = vmatpush1.msra.mxu0 %v130
  %158 = vmatprep.subr.mxu0 0.0
  %159 = vmatpush1.msra.mxu0 %v131
  %160 = vmatprep.subr.mxu0 0.0
  %161 = vmatpush1.msra.mxu0 %v132
  %162 = vmatprep.subr.mxu0 0.0
  %163 = vmatpush1.msra.mxu0 %v133
  %164 = vmatprep.subr.mxu0 0.0
  %165 = vmatpush1.msra.mxu0 %v134
  %166 = vmatprep.subr.mxu0 0.0
  %167 = vmatpush1.msra.mxu0 %v135
  %168 = vmatprep.subr.mxu0 0.0
  %169 = vmatpush1.msra.mxu0 %v136
  %170 = vmatprep.subr.mxu0 0.0
  %171 = vmatpush1.msra.mxu0 %v137
  %172 = vmatprep.subr.mxu0 0.0
  %173 = vmatpush1.msra.mxu0 %v138
  %174 = vmatprep.subr.mxu0 0.0
  %175 = vmatpush1.msra.mxu0 %v139
  %176 = vmatprep.subr.mxu0 0.0
  %177 = vmatpush1.msra.mxu0 %v140
  %178 = vmatprep.subr.mxu0 0.0
  %179 = vmatpush1.msra.mxu0 %v141
  %180 = vmatprep.subr.mxu0 0.0
  %181 = vmatpush1.msra.mxu0 %v142
  %182 = vmatprep.subr.mxu0 0.0
  %183 = vmatpush1.msra.mxu0 0.0
  %184 = vmatprep.subr.mxu0 0.0
  %185 = vmatpush1.msra.mxu0 0.0
  %186 = vmatprep.subr.mxu0 0.0
  %187 = vmatpush1.msra.mxu0 0.0
  %188 = vmatprep.subr.mxu0 0.0
  %189 = vmatpush1.msra.mxu0 0.0
  %190 = vmatprep.subr.mxu0 0.0
  %191 = vmatpush1.msra.mxu0 0.0
  %192 = vmatprep.subr.mxu0 0.0
  %193 = vmatpush1.msra.mxu0 0.0
  %194 = vmatprep.subr.mxu0 0.0
  %195 = vmatpush1.msra.mxu0 0.0
  %196 = vmatprep.subr.mxu0 0.0
  %197 = vmatpush1.msra.mxu0 0.0
  %198 = vmatprep.subr.mxu0 0.0
  %199 = vmatpush1.msra.mxu0 0.0
  %200 = vmatprep.subr.mxu0 0.0
  %201 = vmatpush1.msra.mxu0 0.0
  %202 = vmatprep.subr.mxu0 0.0
  %203 = vmatpush1.msra.mxu0 0.0
  %204 = vmatprep.subr.mxu0 0.0
  %205 = vmatpush1.msra.mxu0 0.0
  %206 = vmatprep.subr.mxu0 0.0
  %207 = vmatpush1.msra.mxu0 0.0
  %208 = vmatprep.subr.mxu0 0.0
  %209 = vmatpush1.msra.mxu0 0.0
  %210 = vmatprep.subr.mxu0 0.0
  %211 = vmatpush1.msra.mxu0 0.0
  %212 = vmatprep.subr.mxu0 0.0
  %213 = vmatpush1.msra.mxu0 0.0
  %214 = vmatprep.mubr.f32.mxu0 0.0
  %215 = vmatmul.mubr.f32.gmra.mrb[0].mxu0 %v126
  %v216 = vpop.f32.mrb[0].mxu0
  %v217 = vadd.f32 %v148, %v216
  %v218 = vpop.f32.mrb[0].mxu0
  %219 = vdwg.mxu0
  %v220 = vmax.f32 %v217, 0.0
  %v221 = vld [vmem:[%s5] sm:$0xff]
  %v222 = vld [vmem:[%s5 + $0x8] sm:$0xff]
  %v223 = vld [vmem:[%s5 + $0x10] sm:$0xff]
  %v224 = vld [vmem:[%s5 + $0x18] sm:$0xff]
  %v225 = vld [vmem:[%s5 + $0x20] sm:$0xff]
  %v226 = vld [vmem:[%s5 + $0x28] sm:$0xff]
  %v227 = vld [vmem:[%s5 + $0x30] sm:$0xff]
  %v228 = vld [vmem:[%s5 + $0x38] sm:$0xff]
  %v229 = vld [vmem:[%s5 + $0x40] sm:$0xff]
  %v230 = vld [vmem:[%s5 + $0x48] sm:$0xff]
  %v231 = vld [vmem:[%s5 + $0x50] sm:$0xff]
  %v232 = vld [vmem:[%s5 + $0x58] sm:$0xff]
  %v233 = vld [vmem:[%s5 + $0x60] sm:$0xff]
  %v234 = vld [vmem:[%s5 + $0x68] sm:$0xff]
  %v235 = vld [vmem:[%s5 + $0x70] sm:$0xff]
  %v236 = vld [vmem:[%s5 + $0x78] sm:$0xff]
  %v237 = vld [vmem:[%s6] sm:$0x1]
  %v239 = vlaneseq
  %v240 = vshrl.u32 %v239, 7
  %v241 = vsub.s32 0, %v240
  %v242 = vrot.slane %v237, %v241
  %244 = vmatprep.subr.mxu0 0.0
  %245 = vmatpush1.msra.mxu0 %v221
  %246 = vmatprep.subr.mxu0 0.0
  %247 = vmatpush1.msra.mxu0 %v222
  %248 = vmatprep.subr.mxu0 0.0
  %249 = vmatpush1.msra.mxu0 %v223
  %250 = vmatprep.subr.mxu0 0.0
  %251 = vmatpush1.msra.mxu0 %v224
  %252 = vmatprep.subr.mxu0 0.0
  %253 = vmatpush1.msra.mxu0 %v225
  %254 = vmatprep.subr.mxu0 0.0
  %255 = vmatpush1.msra.mxu0 %v226
  %256 = vmatprep.subr.mxu0 0.0
  %257 = vmatpush1.msra.mxu0 %v227
  %258 = vmatprep.subr.mxu0 0.0
  %259 = vmatpush1.msra.mxu0 %v228
  %260 = vmatprep.subr.mxu0 0.0
  %261 = vmatpush1.msra.mxu0 %v229
  %262 = vmatprep.subr.mxu0 0.0
  %263 = vmatpush1.msra.mxu0 %v230
  %264 = vmatprep.subr.mxu0 0.0
  %265 = vmatpush1.msra.mxu0 %v231
  %266 = vmatprep.subr.mxu0 0.0
  %267 = vmatpush1.msra.mxu0 %v232
  %268 = vmatprep.subr.mxu0 0.0
  %269 = vmatpush1.msra.mxu0 %v233
  %270 = vmatprep.subr.mxu0 0.0
  %271 = vmatpush1.msra.mxu0 %v234
  %272 = vmatprep.subr.mxu0 0.0
  %273 = vmatpush1.msra.mxu0 %v235
  %274 = vmatprep.subr.mxu0 0.0
  %275 = vmatpush1.msra.mxu0 %v236
  %276 = vmatprep.subr.mxu0 0.0
  %277 = vmatpush1.msra.mxu0 0.0
  %278 = vmatprep.subr.mxu0 0.0
  %279 = vmatpush1.msra.mxu0 0.0
  %280 = vmatprep.subr.mxu0 0.0
  %281 = vmatpush1.msra.mxu0 0.0
  %282 = vmatprep.subr.mxu0 0.0
  %283 = vmatpush1.msra.mxu0 0.0
  %284 = vmatprep.subr.mxu0 0.0
  %285 = vmatpush1.msra.mxu0 0.0
  %286 = vmatprep.subr.mxu0 0.0
  %287 = vmatpush1.msra.mxu0 0.0
  %288 = vmatprep.subr.mxu0 0.0
  %289 = vmatpush1.msra.mxu0 0.0
  %290 = vmatprep.subr.mxu0 0.0
  %291 = vmatpush1.msra.mxu0 0.0
  %292 = vmatprep.subr.mxu0 0.0
  %293 = vmatpush1.msra.mxu0 0.0
  %294 = vmatprep.subr.mxu0 0.0
  %295 = vmatpush1.msra.mxu0 0.0
  %296 = vmatprep.subr.mxu0 0.0
  %297 = vmatpush1.msra.mxu0 0.0
  %298 = vmatprep.subr.mxu0 0.0
  %299 = vmatpush1.msra.mxu0 0.0
  %300 = vmatprep.subr.mxu0 0.0
  %301 = vmatpush1.msra.mxu0 0.0
  %302 = vmatprep.subr.mxu0 0.0
  %303 = vmatpush1.msra.mxu0 0.0
  %304 = vmatprep.subr.mxu0 0.0
  %305 = vmatpush1.msra.mxu0 0.0
  %306 = vmatprep.subr.mxu0 0.0
  %307 = vmatpush1.msra.mxu0 0.0
  %308 = vmatprep.mubr.f32.mxu0 0.0
  %309 = vmatmul.mubr.f32.gmra.mrb[0].mxu0 %v220
  %v310 = vpop.f32.mrb[0].mxu0
  %v311 = vadd.f32 %v242, %v310
  %v312 = vpop.f32.mrb[0].mxu0
  %313 = vdwg.mxu0
  %v314 = vmax.f32 %v311, 0.0
  %v315 = vld [vmem:[%s7] sm:$0xff]
  %v316 = vld [vmem:[%s7 + $0x8] sm:$0xff]
  %v317 = vld [vmem:[%s7 + $0x10] sm:$0xff]
  %v318 = vld [vmem:[%s7 + $0x18] sm:$0xff]
  %v319 = vld [vmem:[%s7 + $0x20] sm:$0xff]
  %v320 = vld [vmem:[%s7 + $0x28] sm:$0xff]
  %v321 = vld [vmem:[%s7 + $0x30] sm:$0xff]
  %v322 = vld [vmem:[%s7 + $0x38] sm:$0xff]
  %v323 = vld [vmem:[%s7 + $0x40] sm:$0xff]
  %v324 = vld [vmem:[%s7 + $0x48] sm:$0xff]
  %v325 = vld [vmem:[%s7 + $0x50] sm:$0xff]
  %v326 = vld [vmem:[%s7 + $0x58] sm:$0xff]
  %v327 = vld [vmem:[%s7 + $0x60] sm:$0xff]
  %v328 = vld [vmem:[%s7 + $0x68] sm:$0xff]
  %v329 = vld [vmem:[%s7 + $0x70] sm:$0xff]
  %v330 = vld [vmem:[%s7 + $0x78] sm:$0xff]
  %v331 = vld [vmem:[%s8] sm:$0x1]
  %v333 = vlaneseq
  %v334 = vshrl.u32 %v333, 7
  %v335 = vsub.s32 0, %v334
  %v336 = vrot.slane %v331, %v335
  %338 = vmatprep.subr.mxu0 0.0
  %339 = vmatpush1.msra.mxu0 %v315
  %340 = vmatprep.subr.mxu0 0.0
  %341 = vmatpush1.msra.mxu0 %v316
  %342 = vmatprep.subr.mxu0 0.0
  %343 = vmatpush1.msra.mxu0 %v317
  %344 = vmatprep.subr.mxu0 0.0
  %345 = vmatpush1.msra.mxu0 %v318
  %346 = vmatprep.subr.mxu0 0.0
  %347 = vmatpush1.msra.mxu0 %v319
  %348 = vmatprep.subr.mxu0 0.0
  %349 = vmatpush1.msra.mxu0 %v320
  %350 = vmatprep.subr.mxu0 0.0
  %351 = vmatpush1.msra.mxu0 %v321
  %352 = vmatprep.subr.mxu0 0.0
  %353 = vmatpush1.msra.mxu0 %v322
  %354 = vmatprep.subr.mxu0 0.0
  %355 = vmatpush1.msra.mxu0 %v323
  %356 = vmatprep.subr.mxu0 0.0
  %357 = vmatpush1.msra.mxu0 %v324
  %358 = vmatprep.subr.mxu0 0.0
  %359 = vmatpush1.msra.mxu0 %v325
  %360 = vmatprep.subr.mxu0 0.0
  %361 = vmatpush1.msra.mxu0 %v326
  %362 = vmatprep.subr.mxu0 0.0
  %363 = vmatpush1.msra.mxu0 %v327
  %364 = vmatprep.subr.mxu0 0.0
  %365 = vmatpush1.msra.mxu0 %v328
  %366 = vmatprep.subr.mxu0 0.0
  %367 = vmatpush1.msra.mxu0 %v329
  %368 = vmatprep.subr.mxu0 0.0
  %369 = vmatpush1.msra.mxu0 %v330
  %370 = vmatprep.subr.mxu0 0.0
  %371 = vmatpush1.msra.mxu0 0.0
  %372 = vmatprep.subr.mxu0 0.0
  %373 = vmatpush1.msra.mxu0 0.0
  %374 = vmatprep.subr.mxu0 0.0
  %375 = vmatpush1.msra.mxu0 0.0
  %376 = vmatprep.subr.mxu0 0.0
  %377 = vmatpush1.msra.mxu0 0.0
  %378 = vmatprep.subr.mxu0 0.0
  %379 = vmatpush1.msra.mxu0 0.0
  %380 = vmatprep.subr.mxu0 0.0
  %381 = vmatpush1.msra.mxu0 0.0
  %382 = vmatprep.subr.mxu0 0.0
  %383 = vmatpush1.msra.mxu0 0.0
  %384 = vmatprep.subr.mxu0 0.0
  %385 = vmatpush1.msra.mxu0 0.0
  %386 = vmatprep.subr.mxu0 0.0
  %387 = vmatpush1.msra.mxu0 0.0
  %388 = vmatprep.subr.mxu0 0.0
  %389 = vmatpush1.msra.mxu0 0.0
  %390 = vmatprep.subr.mxu0 0.0
  %391 = vmatpush1.msra.mxu0 0.0
  %392 = vmatprep.subr.mxu0 0.0
  %393 = vmatpush1.msra.mxu0 0.0
  %394 = vmatprep.subr.mxu0 0.0
  %395 = vmatpush1.msra.mxu0 0.0
  %396 = vmatprep.subr.mxu0 0.0
  %397 = vmatpush1.msra.mxu0 0.0
  %398 = vmatprep.subr.mxu0 0.0
  %399 = vmatpush1.msra.mxu0 0.0
  %400 = vmatprep.subr.mxu0 0.0
  %401 = vmatpush1.msra.mxu0 0.0
  %402 = vmatprep.mubr.f32.mxu0 0.0
  %403 = vmatmul.mubr.f32.gmra.mrb[0].mxu0 %v314
  %v404 = vpop.f32.mrb[0].mxu0
  %v405 = vadd.f32 %v336, %v404
  %v406 = vpop.f32.mrb[0].mxu0
  %407 = vdwg.mxu0
  %v408 = vxor.u32 %v405, 2147483648
  %v409 = vmul.f32 %v408, 1.442695
  %v410 = vpow.pop %v409
  %v411 = vadd.f32 %v410, 1.0
  %v412 = vrcp.pop %v411
  %v413 = vmul.f32 1.0, %v412
  %414 = vst [vmem:[%s9] sm:$0xff] %v413
  // Predicated region
  $region38: #{_discriminator_probs_impl.1} parent=0 // pred_check
    _
  $region39: #{_discriminator_probs_impl.1} parent=0 // pred_check_branch
    %416 = sbr.rel (0) target = $region41
  $region40: #{_discriminator_probs_impl.1} parent=0 // pred_region
    _
  $region41: #{_discriminator_probs_impl.1} parent=0 // pred_fallthru
    _
  // Predicated region
  $region42: #{_discriminator_probs_impl.1} parent=0 // pred_check
    _
  $region43: #{_discriminator_probs_impl.1} parent=0 // pred_check_branch
    %418 = sbr.rel (0) target = $region45
  $region44: #{_discriminator_probs_impl.1} parent=0 // pred_region
    _
  $region45: #{_discriminator_probs_impl.1} parent=0 // pred_fallthru
    _

</llo_original>
